<compile_context>
chip_gen: v6e
topology: v6e:2x2x1
jax: 0.10.0
libtpu: 0.0.40
codegen_flags: <defaults>
</compile_context>

<pallas_src>
import jax
import jax.numpy as jnp
from jax.experimental import pallas as pl
from jax.experimental.pallas import tpu as pltpu

_LANES = 128
# 2048 rows * 128 lanes * 4 B = 1 MiB per f32 tile.
# Working set = (1 in + 4 out) * 2 buffers = 10 tiles ~= 10 MiB -> fits the
# default scoped VMEM on v5e (16 MiB) / v6e / v7x (32 MiB).
_MAX_BLOCK_ROWS = 2048
# Below this, custom-call launch overhead dominates; plain jnp is faster.
_SMALL_FALLBACK_ELEMS = 1 << 20


def _elementwise_kernel(x_ref, o1_ref, o2_ref, o3_ref, o4_ref):
    x = x_ref[...]
    o1_ref[...] = x + 5.0
    o2_ref[...] = x - 3.0
    o3_ref[...] = x * 2.0
    # Plain divide: bit-exact vs the reference, fully hidden behind the 4 stores
    # (kernel is HBM-bandwidth bound, VALU/EUP slots have huge slack).
    o4_ref[...] = x / (1.0 + x)


def _jnp_forward(x):
    return (x + 5.0, x - 3.0, x * 2.0, x / (1.0 + x))


def pt_module_forward(x, *, min_pallas_elems=_SMALL_FALLBACK_ELEMS):
    """Pallas equivalent of PtModule.forward: returns (x+5, x-3, x*2, x/(1+x))."""
    orig_shape = x.shape
    n = x.size

    # Small tensors: the Pallas custom-call overhead dominates -> plain jnp.
    if n < min_pallas_elems:
        return _jnp_forward(x)

    flat = jnp.ravel(x)
    n_main = (n // _LANES) * _LANES
    n_tail = n - n_main

    if n_main == 0:
        return _jnp_forward(x)

    # --- lane-dense main slab: (rows, 128), NO padding copies ---
    rows = n_main // _LANES
    main = flat[:n_main].reshape(rows, _LANES)

    if rows <= _MAX_BLOCK_ROWS:
        # Full-array block: exempt from the (8,128) divisibility rule, and any
        # dtype's sublane packing, so no row rounding/padding is needed.
        block_rows = rows
    else:
        # 2048 is a multiple of 8/16/32 sublanes (f32/bf16/int8 packing).
        block_rows = _MAX_BLOCK_ROWS
    grid = (pl.cdiv(rows, block_rows),)  # ragged last block masked by Pallas
    block = pl.BlockSpec((block_rows, _LANES), lambda i: (i, 0))
    out_shape = jax.ShapeDtypeStruct((rows, _LANES), x.dtype)

    itemsize = jnp.dtype(x.dtype).itemsize
    cost = pl.CostEstimate(
        flops=4 * n_main,
        transcendentals=n_main,          # the divide lowers via the EUP
        bytes_accessed=5 * n_main * itemsize,
    )

    outs = pl.pallas_call(
        _elementwise_kernel,
        out_shape=(out_shape, out_shape, out_shape, out_shape),
        grid=grid,
        in_specs=[block],
        out_specs=(block, block, block, block),
        compiler_params=pltpu.CompilerParams(
            dimension_semantics=("parallel",),
        ),
        cost_estimate=cost,
    )(main)

    # --- lane tail (< 128 elements): tiny plain-jnp epilogue, no full-array pad ---
    if n_tail:
        tail = flat[n_main:]
        tail_outs = _jnp_forward(tail)
        return tuple(
            jnp.concatenate([jnp.ravel(o), t]).reshape(orig_shape)
            for o, t in zip(outs, tail_outs)
        )
    return tuple(jnp.ravel(o).reshape(orig_shape) for o in outs)


if __name__ == "__main__":
    key = jax.random.PRNGKey(0)

    # Small shape from the module spec; force the Pallas path so the kernel runs.
    x = jax.random.normal(key, (2, 4, 16, 16), dtype=jnp.float32)
    outs = pt_module_forward(x, min_pallas_elems=0)
    outs = jax.block_until_ready(outs)

    refs = _jnp_forward(x)
    for o, r in zip(outs, refs):
        assert o.shape == r.shape and o.dtype == r.dtype
        assert jnp.allclose(o, r, atol=1e-6, rtol=1e-6)

    # Second check exercising the multi-step grid (ragged last block) and the
    # <128-element lane-tail epilogue.
    key2 = jax.random.PRNGKey(1)
    y = jax.random.normal(key2, (513, 517), dtype=jnp.float32)  # 2072 rows + tail of 5
    outs2 = jax.block_until_ready(pt_module_forward(y, min_pallas_elems=0))
    refs2 = _jnp_forward(y)
    for o, r in zip(outs2, refs2):
        assert o.shape == r.shape and o.dtype == r.dtype
        assert jnp.allclose(o, r, atol=1e-6, rtol=1e-6)

    print("KERNEL_OK")
</pallas_src>

<mosaic_0001>
module attributes {stable_mosaic.version = 11 : i64} {
  func.func @_elementwise_kernel(%arg0: i32, %arg1: memref<16x128xf32, #tpu.memory_space<vmem>>, %arg2: memref<16x128xf32, #tpu.memory_space<vmem>>, %arg3: memref<16x128xf32, #tpu.memory_space<vmem>>, %arg4: memref<16x128xf32, #tpu.memory_space<vmem>>, %arg5: memref<16x128xf32, #tpu.memory_space<vmem>>) attributes {dimension_semantics = [#tpu.dimension_semantics<parallel>], iteration_bounds = array<i64: 1>, scalar_prefetch = 0 : i64, scratch_operands = 0 : i64, tpu.core_type = #tpu.core_type<tc>, window_params = [{transform_indices = @transform_0, window_bounds = array<i64: 16, 128>}, {transform_indices = @transform_1, window_bounds = array<i64: 16, 128>}, {transform_indices = @transform_2, window_bounds = array<i64: 16, 128>}, {transform_indices = @transform_3, window_bounds = array<i64: 16, 128>}, {transform_indices = @transform_4, window_bounds = array<i64: 16, 128>}]} {
    %c0 = arith.constant 0 : index
    %c0_0 = arith.constant 0 : index
    %0 = vector.load %arg1[%c0, %c0_0] : memref<16x128xf32, #tpu.memory_space<vmem>>, vector<16x128xf32>
    %cst = arith.constant 5.000000e+00 : f32
    %1 = vector.broadcast %cst : f32 to vector<16x128xf32>
    %2 = arith.addf %0, %1 : vector<16x128xf32>
    %c0_1 = arith.constant 0 : index
    %c0_2 = arith.constant 0 : index
    %3 = vector.load %arg2[%c0_1, %c0_2] : memref<16x128xf32, #tpu.memory_space<vmem>>, vector<16x128xf32>
    tpu.vector_store %arg2[%c0_1, %c0_2], %2 {strides = array<i32>} : memref<16x128xf32, #tpu.memory_space<vmem>>, vector<16x128xf32>,
    %cst_3 = arith.constant 3.000000e+00 : f32
    %4 = vector.broadcast %cst_3 : f32 to vector<16x128xf32>
    %5 = arith.subf %0, %4 : vector<16x128xf32>
    %c0_4 = arith.constant 0 : index
    %c0_5 = arith.constant 0 : index
    %6 = vector.load %arg3[%c0_4, %c0_5] : memref<16x128xf32, #tpu.memory_space<vmem>>, vector<16x128xf32>
    tpu.vector_store %arg3[%c0_4, %c0_5], %5 {strides = array<i32>} : memref<16x128xf32, #tpu.memory_space<vmem>>, vector<16x128xf32>,
    %cst_6 = arith.constant 2.000000e+00 : f32
    %7 = vector.broadcast %cst_6 : f32 to vector<16x128xf32>
    %8 = arith.mulf %0, %7 : vector<16x128xf32>
    %c0_7 = arith.constant 0 : index
    %c0_8 = arith.constant 0 : index
    %9 = vector.load %arg4[%c0_7, %c0_8] : memref<16x128xf32, #tpu.memory_space<vmem>>, vector<16x128xf32>
    tpu.vector_store %arg4[%c0_7, %c0_8], %8 {strides = array<i32>} : memref<16x128xf32, #tpu.memory_space<vmem>>, vector<16x128xf32>,
    %cst_9 = arith.constant 1.000000e+00 : f32
    %10 = vector.broadcast %cst_9 : f32 to vector<16x128xf32>
    %11 = arith.addf %10, %0 : vector<16x128xf32>
    %12 = arith.divf %0, %11 : vector<16x128xf32>
    %c0_10 = arith.constant 0 : index
    %c0_11 = arith.constant 0 : index
    %13 = vector.load %arg5[%c0_10, %c0_11] : memref<16x128xf32, #tpu.memory_space<vmem>>, vector<16x128xf32>
    tpu.vector_store %arg5[%c0_10, %c0_11], %12 {strides = array<i32>} : memref<16x128xf32, #tpu.memory_space<vmem>>, vector<16x128xf32>,
    return
  }
  func.func @transform_0(%arg0: i32) -> (i32, i32) {
    %c0_i32 = arith.constant 0 : i32
    %c0_i32_0 = arith.constant 0 : i32
    return %arg0, %c0_i32 : i32, i32
  }
  func.func @transform_1(%arg0: i32) -> (i32, i32) {
    %c0_i32 = arith.constant 0 : i32
    %c0_i32_0 = arith.constant 0 : i32
    return %arg0, %c0_i32 : i32, i32
  }
  func.func @transform_2(%arg0: i32) -> (i32, i32) {
    %c0_i32 = arith.constant 0 : i32
    %c0_i32_0 = arith.constant 0 : i32
    return %arg0, %c0_i32 : i32, i32
  }
  func.func @transform_3(%arg0: i32) -> (i32, i32) {
    %c0_i32 = arith.constant 0 : i32
    %c0_i32_0 = arith.constant 0 : i32
    return %arg0, %c0_i32 : i32, i32
  }
  func.func @transform_4(%arg0: i32) -> (i32, i32) {
    %c0_i32 = arith.constant 0 : i32
    %c0_i32_0 = arith.constant 0 : i32
    return %arg0, %c0_i32 : i32, i32
  }
}

</mosaic_0001>

<llo_original>
// kernel: tpu_custom_call.1
$region0: #{tpu_custom_call.1}
  #allocation0 [shape = 'u32[]', space=smem, size = 0x4, offset = 0x4, fixed_abs, tag = 'smem constant byte address 0x4 - core index']
  #allocation1 [shape = 'u32[144,128]{1,0:T(1,128)}', space=vmem, size = 0x12000, scoped, tag = 'internal scratch']
  %s0 = inlined_call_operand.hbm [shape: f32[16,128], index: 0, kind: input, shape index: {}]
  %s1 = inlined_call_operand.hbm [shape: f32[16,128], index: 1, kind: output, shape index: {0}]
  %s2 = inlined_call_operand.hbm [shape: f32[16,128], index: 2, kind: output, shape index: {1}]
  %s3 = inlined_call_operand.hbm [shape: f32[16,128], index: 3, kind: output, shape index: {2}]
  %s4 = inlined_call_operand.hbm [shape: f32[16,128], index: 4, kind: output, shape index: {3}]
  %5 = xla_tuple %s1, %s2, %s3, %s4
  %s6 = sld [smem:[#allocation0]]
  $region42: #{tpu_custom_call.1} parent=0
    _
  %s8 = ssub.s32 1, %s6
  %s9 = scalar_select 0, %s8, %s6
  $region1: #{tpu_custom_call.1} parent=0
    #allocation2 [shape = 'u8[8192]{0}', space=vmem, size = 0x2000, scoped, tag = 'input window, operand 0, single buffered']
    #allocation3 [shape = 's32[1]{0}', space=sflag, size = 0x4, scoped, tag = 'scoped memory for tpu_custom_call.1']
    #allocation4 [shape = 's32[1]{0}', space=sflag, size = 0x4, scoped, tag = 'scoped memory for tpu_custom_call.1']
    #allocation5 [shape = 'u8[8192]{0}', space=vmem, size = 0x2000, scoped, tag = 'output window, operand 0, single buffered']
    #allocation6 [shape = 'u8[8192]{0}', space=vmem, size = 0x2000, scoped, tag = 'output window, operand 1, single buffered']
    #allocation7 [shape = 's32[1]{0}', space=sflag, size = 0x4, scoped, tag = 'scoped memory for tpu_custom_call.1']
    #allocation8 [shape = 'u8[8192]{0}', space=vmem, size = 0x2000, scoped, tag = 'output window, operand 2, single buffered']
    #allocation9 [shape = 'u8[8192]{0}', space=vmem, size = 0x2000, scoped, tag = 'output window, operand 3, single buffered']
    #allocation10 [shape = 's32[1]{0}', space=sflag, size = 0x4, scoped, tag = 'scoped memory for tpu_custom_call.1']
    %10 = vsyncpa [#allocation3], 0
    %11 = vsyncpa [#allocation4], 0
    %12 = vsyncpa [#allocation7], 0
    %13 = vsyncpa [#allocation10], 0
    // Predicated region
    $region2: #{tpu_custom_call.1} parent=1 // pred_check
      _
    $region3: #{tpu_custom_call.1} parent=1 // pred_check_branch
      %15 = sbr.rel (0) target = $region5
    $region4: #{tpu_custom_call.1} parent=1 // pred_region
      %s17 = ssub.s32 256, 256
      %18 = vsyncadd [#allocation3], %s17
      %s19 = sshll.u32 [#allocation2], 4
      %s20 = int_to_ptr.vmem [resolvable:$true] %s19
      %25 = dma.hbm_to_vmem [thread:$0]  %s0, 256, %s20, [#allocation3], 128, 128, 8
    $region5: #{tpu_custom_call.1} parent=1 // pred_fallthru
      _
    // Predicated region
    $region6: #{tpu_custom_call.1} parent=1 // pred_check
      _
    $region7: #{tpu_custom_call.1} parent=1 // pred_check_branch
      %27 = sbr.rel (0) target = $region9
    $region8: #{tpu_custom_call.1} parent=1 // pred_region
      %28 = dma.done [#allocation3], 256
    $region9: #{tpu_custom_call.1} parent=1 // pred_fallthru
      _
    %v29 = vld [vmem:[#allocation2] sm:$0xff]
    %v30 = vld [vmem:[#allocation2 + $0x8] sm:$0xff]
    %v31 = vadd.f32 %v29, 5.0
    %v32 = vadd.f32 %v30, 5.0
    %33 = vst [vmem:[#allocation5] sm:$0xff] %v31
    %34 = vst [vmem:[#allocation5 + $0x8] sm:$0xff] %v32
    %v35 = vsub.f32 %v29, 3.0
    %v36 = vsub.f32 %v30, 3.0
    %37 = vst [vmem:[#allocation6] sm:$0xff] %v35
    %38 = vst [vmem:[#allocation6 + $0x8] sm:$0xff] %v36
    %v39 = vmul.f32 %v29, 2.0
    %v40 = vmul.f32 %v30, 2.0
    %41 = vst [vmem:[#allocation8] sm:$0xff] %v39
    %42 = vst [vmem:[#allocation8 + $0x8] sm:$0xff] %v40
    %v43 = vadd.f32 %v29, 1.0
    %v44 = vadd.f32 %v30, 1.0
    %v45 = vrcp.pop %v43
    %v46 = vmul.f32 %v29, %v45
    %v47 = vrcp.pop %v44
    %v48 = vmul.f32 %v30, %v47
    %49 = vst [vmem:[#allocation9] sm:$0xff] %v46
    %50 = vst [vmem:[#allocation9 + $0x8] sm:$0xff] %v48
    // Predicated region
    $region10: #{tpu_custom_call.1} parent=1 // pred_check
      _
    $region11: #{tpu_custom_call.1} parent=1 // pred_check_branch
      %52 = sbr.rel (0) target = $region13
    $region12: #{tpu_custom_call.1} parent=1 // pred_region
      %s54 = ssub.s32 256, 256
      %55 = vsyncadd [#allocation4], %s54
      %s56 = sshll.u32 [#allocation5], 4
      %s57 = int_to_ptr.vmem [resolvable:$true] %s56
      %62 = dma.vmem_to_hbm [thread:$0]  %s57, 256, %s1, [#allocation4], 128, 128, 8
    $region13: #{tpu_custom_call.1} parent=1 // pred_fallthru
      _
    // Predicated region
    $region14: #{tpu_custom_call.1} parent=1 // pred_check
      _
    $region15: #{tpu_custom_call.1} parent=1 // pred_check_branch
      %64 = sbr.rel (0) target = $region17
    $region16: #{tpu_custom_call.1} parent=1 // pred_region
      %s66 = ssub.s32 256, 256
      %67 = vsyncadd [#allocation7], %s66
      %s68 = sshll.u32 [#allocation6], 4
      %s69 = int_to_ptr.vmem [resolvable:$true] %s68
      %74 = dma.vmem_to_hbm [thread:$0]  %s69, 256, %s2, [#allocation7], 128, 128, 8
    $region17: #{tpu_custom_call.1} parent=1 // pred_fallthru
      _
    // Predicated region
    $region18: #{tpu_custom_call.1} parent=1 // pred_check
      _
    $region19: #{tpu_custom_call.1} parent=1 // pred_check_branch
      %76 = sbr.rel (0) target = $region21
    $region20: #{tpu_custom_call.1} parent=1 // pred_region
      %s78 = ssub.s32 256, 256
      %79 = vsyncadd [#allocation7], %s78
      %s80 = sshll.u32 [#allocation8], 4
      %s81 = int_to_ptr.vmem [resolvable:$true] %s80
      %86 = dma.vmem_to_hbm [thread:$0]  %s81, 256, %s3, [#allocation7], 128, 128, 8
    $region21: #{tpu_custom_call.1} parent=1 // pred_fallthru
      _
    // Predicated region
    $region22: #{tpu_custom_call.1} parent=1 // pred_check
      _
    $region23: #{tpu_custom_call.1} parent=1 // pred_check_branch
      %88 = sbr.rel (0) target = $region25
    $region24: #{tpu_custom_call.1} parent=1 // pred_region
      %s90 = ssub.s32 256, 256
      %91 = vsyncadd [#allocation10], %s90
      %s92 = sshll.u32 [#allocation9], 4
      %s93 = int_to_ptr.vmem [resolvable:$true] %s92
      %98 = dma.vmem_to_hbm [thread:$0]  %s93, 256, %s4, [#allocation10], 128, 128, 8
    $region25: #{tpu_custom_call.1} parent=1 // pred_fallthru
      _
    // Predicated region
    $region26: #{tpu_custom_call.1} parent=1 // pred_check
      _
    $region27: #{tpu_custom_call.1} parent=1 // pred_check_branch
      %100 = sbr.rel (0) target = $region29
    $region28: #{tpu_custom_call.1} parent=1 // pred_region
      %101 = dma.done [#allocation4], 256
    $region29: #{tpu_custom_call.1} parent=1 // pred_fallthru
      _
    // Predicated region
    $region30: #{tpu_custom_call.1} parent=1 // pred_check
      _
    $region31: #{tpu_custom_call.1} parent=1 // pred_check_branch
      %103 = sbr.rel (0) target = $region33
    $region32: #{tpu_custom_call.1} parent=1 // pred_region
      %104 = dma.done [#allocation7], 256
    $region33: #{tpu_custom_call.1} parent=1 // pred_fallthru
      _
    // Predicated region
    $region34: #{tpu_custom_call.1} parent=1 // pred_check
      _
    $region35: #{tpu_custom_call.1} parent=1 // pred_check_branch
      %106 = sbr.rel (0) target = $region37
    $region36: #{tpu_custom_call.1} parent=1 // pred_region
      %107 = dma.done [#allocation7], 256
    $region37: #{tpu_custom_call.1} parent=1 // pred_fallthru
      _
    // Predicated region
    $region38: #{tpu_custom_call.1} parent=1 // pred_check
      _
    $region39: #{tpu_custom_call.1} parent=1 // pred_check_branch
      %109 = sbr.rel (0) target = $region41
    $region40: #{tpu_custom_call.1} parent=1 // pred_region
      %110 = dma.done [#allocation10], 256
    $region41: #{tpu_custom_call.1} parent=1 // pred_fallthru
      _
    %111 = vsyncpa [#allocation3], 1
    %112 = vsyncpa [#allocation4], 1
    %113 = vsyncpa [#allocation7], 1
    %114 = vsyncpa [#allocation10], 1

</llo_original>
